<compile_context>
chip_gen: v7x
topology: tpu7x:2x2x1
jax: 0.10.0
libtpu: 0.0.40
codegen_flags: <defaults>
</compile_context>

<pallas_src>
import math

import jax
import jax.numpy as jnp
from jax.experimental import pallas as pl
from jax.experimental.pallas import tpu as pltpu


def _round_up(v, mult):
    return ((v + mult - 1) // mult) * mult


def make_arc_margin_kernel(s, m, easy_margin, ls_eps, out_features,
                           tile_b, tile_c, x_resident):
    cos_m = math.cos(m)
    sin_m = math.sin(m)
    th = math.cos(math.pi - m)
    mm = math.sin(math.pi - m) * m

    def kernel(xn_ref, wT_ref, winv_ref, label_ref, out_ref):
        j = pl.program_id(0)          # class tile (outer)

        if x_resident:
            i = pl.program_id(1)      # batch tile (inner)
            row0 = pl.multiple_of(i * tile_b, tile_b)
            xn = xn_ref[pl.ds(row0, tile_b), :]        # slice resident x
        else:
            xn = xn_ref[...]

        # Raw-weight matmul on the MXU (bf16 or f32 operands, f32 accumulate).
        raw = jnp.dot(xn, wT_ref[...], preferred_element_type=jnp.float32)
        cosine = raw * winv_ref[...]                   # fold 1/||w|| (1, TC)

        # One-hot match: subtract the tile base from the labels ((TB,1) op)
        # and compare against a plain iota.
        labels = label_ref[...]                        # (TB, 1) int32
        local_label = labels - j * tile_c
        class_ids = jax.lax.broadcasted_iota(jnp.int32, cosine.shape, 1)
        match = class_ids == local_label               # (TB, TC) bool

        if ls_eps > 0.0:
            # Label smoothing touches every column -> dense phi.
            sine = jnp.sqrt(jnp.clip(1.0 - cosine * cosine, 0.0, 1.0))
            phi = cosine * cos_m - sine * sin_m
            if easy_margin:
                phi = jnp.where(cosine > 0.0, phi, cosine)
            else:
                phi = jnp.where(cosine > th, phi, cosine - mm)
            one_hot = ((1.0 - ls_eps) * match.astype(jnp.float32)
                       + ls_eps / out_features)
            out = (cosine + one_hot * (phi - cosine)) * s
        else:
            # Margin only affects the label column: compute phi per row on a
            # (TB,1) vector instead of the whole (TB,TC) tile.
            match_f = match.astype(jnp.float32)
            cos_l = jnp.sum(cosine * match_f, axis=-1, keepdims=True)  # (TB,1)
            sine_l = jnp.sqrt(jnp.clip(1.0 - cos_l * cos_l, 0.0, 1.0))
            phi_l = cos_l * cos_m - sine_l * sin_m
            if easy_margin:
                phi_l = jnp.where(cos_l > 0.0, phi_l, cos_l)
            else:
                phi_l = jnp.where(cos_l > th, phi_l, cos_l - mm)
            out = (cosine + match_f * (phi_l - cos_l)) * s
        out_ref[...] = out.astype(out_ref.dtype)

    return kernel


def arc_margin_product(x, weight, label, *, s=30.0, m=0.5,
                       easy_margin=False, ls_eps=0.0,
                       tile_b=None, tile_c=None,
                       mxu_dtype=jnp.bfloat16):
    """ArcMarginProduct.forward(x, label) -> (B, out_features) float32 logits."""
    B, D = x.shape
    C, Dw = weight.shape
    assert D == Dw, "embedding dims must match"

    # Lane-dense class tiles (multiple of 128), sublane-aligned batch tiles
    # (multiple of 8). Defaults fill the 256-wide MXU while keeping the
    # double-buffered weight stream well inside v7x's 64 MiB VMEM.
    if tile_b is None:
        tile_b = min(_round_up(B, 8), 256)
    if tile_c is None:
        tile_c = min(_round_up(C, 128), 512)
    B_pad = _round_up(B, tile_b)
    C_pad = _round_up(C, tile_c)

    eps = 1e-12          # F.normalize default eps
    eps_sq = eps * eps   # rsqrt(max(sum_sq, eps^2)) == 1 / max(||.||, eps)

    # x normalization in the wrapper (tiny, fuses in XLA), then cast for MXU.
    x32 = x.astype(jnp.float32)
    x_inv = jax.lax.rsqrt(
        jnp.maximum(jnp.sum(x32 * x32, axis=-1, keepdims=True), eps_sq))
    xn = jnp.pad(x32 * x_inv, ((0, B_pad - B), (0, 0))).astype(mxu_dtype)

    # Per-class inverse norm (f32, computed before padding so padded class
    # columns get exactly 0) streamed as a tiny (1, C_pad) row; raw weight is
    # padded, transposed to (D, C_pad), and cast for the MXU stream.
    w32 = weight.astype(jnp.float32)
    w_inv = jax.lax.rsqrt(jnp.maximum(jnp.sum(w32 * w32, axis=-1), eps_sq))
    w_inv = jnp.pad(w_inv, (0, C_pad - C)).reshape(1, C_pad)
    w_t = jnp.pad(weight, ((0, C_pad - C), (0, 0))).T.astype(mxu_dtype)

    label2d = jnp.pad(label.astype(jnp.int32), (0, B_pad - B)).reshape(B_pad, 1)

    # Keep normalized x resident in VMEM (single DMA) when it is small.
    x_resident = B_pad * D * jnp.dtype(mxu_dtype).itemsize <= (4 << 20)
    if x_resident:
        x_spec = pl.BlockSpec((B_pad, D), lambda j, i: (0, 0))
    else:
        x_spec = pl.BlockSpec((tile_b, D), lambda j, i: (i, 0))

    kernel = make_arc_margin_kernel(s, m, easy_margin, ls_eps, C,
                                    tile_b, tile_c, x_resident)

    # Class axis OUTER, batch axis INNER: weight / w_inv block indices are
    # constant across the inner loop -> each weight tile is DMA'd once.
    grid = (C_pad // tile_c, B_pad // tile_b)

    out = pl.pallas_call(
        kernel,
        out_shape=jax.ShapeDtypeStruct((B_pad, C_pad), jnp.float32),
        grid_spec=pltpu.PrefetchScalarGridSpec(
            num_scalar_prefetch=0,
            grid=grid,
            in_specs=[
                x_spec,                                             # normalized x
                pl.BlockSpec((D, tile_c), lambda j, i: (0, j)),     # weight^T
                pl.BlockSpec((1, tile_c), lambda j, i: (0, j)),     # 1/||w||
                pl.BlockSpec((tile_b, 1), lambda j, i: (i, 0)),     # labels
            ],
            out_specs=pl.BlockSpec((tile_b, tile_c), lambda j, i: (i, j)),
        ),
        compiler_params=pltpu.CompilerParams(
            dimension_semantics=("parallel", "arbitrary"),
            vmem_limit_bytes=48 * 1024 * 1024,
        ),
    )(xn, w_t, w_inv, label2d)

    return out[:B, :C]


if __name__ == "__main__":
    # Small shapes consistent with the module: batch=8 embeddings of size 32,
    # 16 classes (class dim is padded to 128 internally and sliced back).
    B, in_features, out_features = 8, 32, 16
    s_scale, margin = 30.0, 0.5

    key = jax.random.PRNGKey(0)
    kx, kw, kl = jax.random.split(key, 3)

    x = jax.random.normal(kx, (B, in_features), dtype=jnp.float32)

    # Deterministic Xavier-uniform init matching nn.init.xavier_uniform_ on a
    # (out_features, in_features) parameter.
    bound = math.sqrt(6.0 / (in_features + out_features))
    weight = jax.random.uniform(kw, (out_features, in_features),
                                dtype=jnp.float32, minval=-bound, maxval=bound)

    label = jax.random.randint(kl, (B,), 0, out_features, dtype=jnp.int32)

    # Pure-JAX reference (same math as the PyTorch module).
    def ref(x, w, label, ls_eps=0.0):
        xn = x / jnp.maximum(jnp.linalg.norm(x, axis=-1, keepdims=True), 1e-12)
        wn = w / jnp.maximum(jnp.linalg.norm(w, axis=-1, keepdims=True), 1e-12)
        cosine = xn @ wn.T
        sine = jnp.sqrt(1.0 - cosine ** 2)
        phi = cosine * math.cos(margin) - sine * math.sin(margin)
        th = math.cos(math.pi - margin)
        mm = math.sin(math.pi - margin) * margin
        phi = jnp.where(cosine > th, phi, cosine - mm)
        one_hot = jax.nn.one_hot(label, out_features, dtype=jnp.float32)
        if ls_eps > 0.0:
            one_hot = (1.0 - ls_eps) * one_hot + ls_eps / out_features
        return (one_hot * phi + (1.0 - one_hot) * cosine) * s_scale

    # 1) Exact-math path (f32 MXU operands): tight tolerance.
    out_f32 = arc_margin_product(x, weight, label, s=s_scale, m=margin,
                                 easy_margin=False, ls_eps=0.0,
                                 mxu_dtype=jnp.float32)
    jax.block_until_ready(out_f32)
    expected = ref(x, weight, label)
    assert out_f32.shape == (B, out_features)
    assert jnp.allclose(out_f32, expected, atol=1e-4, rtol=1e-4), (
        float(jnp.max(jnp.abs(out_f32 - expected))))

    # 2) Label-smoothing path (exercises the dense-phi branch).
    out_ls = arc_margin_product(x, weight, label, s=s_scale, m=margin,
                                easy_margin=False, ls_eps=0.1,
                                mxu_dtype=jnp.float32)
    jax.block_until_ready(out_ls)
    expected_ls = ref(x, weight, label, ls_eps=0.1)
    assert jnp.allclose(out_ls, expected_ls, atol=1e-4, rtol=1e-4), (
        float(jnp.max(jnp.abs(out_ls - expected_ls))))

    # 3) Default fast path (bf16 MXU operands, f32 accumulation/epilogue):
    #    looser tolerance per bf16 rounding, amplified by s=30.
    out_bf16 = arc_margin_product(x, weight, label, s=s_scale, m=margin,
                                  easy_margin=False, ls_eps=0.0)
    jax.block_until_ready(out_bf16)
    assert jnp.allclose(out_bf16, expected, atol=0.5, rtol=0.0), (
        float(jnp.max(jnp.abs(out_bf16 - expected))))

    print("KERNEL_OK")
</pallas_src>

<mosaic_0001>
module attributes {stable_mosaic.version = 11 : i64} {
  func.func @kernel(%arg0: i32, %arg1: i32, %arg2: memref<8x32xf32, #tpu.memory_space<vmem>>, %arg3: memref<32x128xf32, #tpu.memory_space<vmem>>, %arg4: memref<1x128xf32, #tpu.memory_space<vmem>>, %arg5: memref<8x1xi32, #tpu.memory_space<vmem>>, %arg6: memref<8x128xf32, #tpu.memory_space<vmem>>) attributes {dimension_semantics = [#tpu.dimension_semantics<parallel>, #tpu.dimension_semantics<arbitrary>], iteration_bounds = array<i64: 1, 1>, scalar_prefetch = 0 : i64, scratch_operands = 0 : i64, tpu.core_type = #tpu.core_type<tc>, window_params = [{pipeline_mode = #tpu.pipeline_mode<synchronous>, transform_indices = @transform_0, window_bounds = array<i64: 8, 32>}, {transform_indices = @transform_1, window_bounds = array<i64: 32, 128>}, {transform_indices = @transform_2, window_bounds = array<i64: 1, 128>}, {transform_indices = @transform_3, window_bounds = array<i64: 8, 1>}, {transform_indices = @transform_4, window_bounds = array<i64: 8, 128>}]} {
    %c8_i32 = arith.constant 8 : i32
    %0 = arith.muli %arg1, %c8_i32 : i32
    %1 = tpu.assume_multiple %0, 8 : i32
    %2 = arith.index_cast %1 : i32 to index
    %c0 = arith.constant 0 : index
    %3 = vector.load %arg2[%2, %c0] : memref<8x32xf32, #tpu.memory_space<vmem>>, vector<8x32xf32>
    %c0_0 = arith.constant 0 : index
    %c0_1 = arith.constant 0 : index
    %4 = vector.load %arg3[%c0_0, %c0_1] : memref<32x128xf32, #tpu.memory_space<vmem>>, vector<32x128xf32>
    %cst = arith.constant dense<0.000000e+00> : vector<8x128xf32>
    %5 = tpu.matmul %3, %4, %cst {dimension_numbers = #tpu.dot_dimension_numbers<[1], [0], [0], [1], [0, 0, 1, 1], [], []>} : vector<8x32xf32>, vector<32x128xf32>, vector<8x128xf32> -> vector<8x128xf32>
    %c0_2 = arith.constant 0 : index
    %c0_3 = arith.constant 0 : index
    %6 = vector.load %arg4[%c0_2, %c0_3] : memref<1x128xf32, #tpu.memory_space<vmem>>, vector<1x128xf32>
    %7 = vector.broadcast %6 : vector<1x128xf32> to vector<8x128xf32>
    %8 = arith.mulf %5, %7 : vector<8x128xf32>
    %c0_4 = arith.constant 0 : index
    %c0_5 = arith.constant 0 : index
    %9 = vector.load %arg5[%c0_4, %c0_5] : memref<8x1xi32, #tpu.memory_space<vmem>>, vector<8x1xi32>
    %c128_i32 = arith.constant 128 : i32
    %10 = arith.muli %arg0, %c128_i32 : i32
    %11 = vector.broadcast %10 : i32 to vector<8x1xi32>
    %12 = arith.subi %9, %11 : vector<8x1xi32>
    %13 = tpu.iota {dimensions = array<i32: 1>} : vector<8x128xi32>
    %14 = vector.broadcast %12 : vector<8x1xi32> to vector<8x128xi32>
    %15 = arith.cmpi eq, %13, %14 : vector<8x128xi32>
    %16 = arith.extui %15 : vector<8x128xi1> to vector<8x128xi32>
    %17 = arith.sitofp %16 : vector<8x128xi32> to vector<8x128xf32>
    %18 = arith.mulf %8, %17 : vector<8x128xf32>
    %cst_6 = arith.constant dense<0.000000e+00> : vector<8xf32>
    %19 = vector.multi_reduction <add>, %18, %cst_6 [1] : vector<8x128xf32> to vector<8xf32>
    %20 = vector.shape_cast %19 : vector<8xf32> to vector<8x1xf32>
    %21 = arith.mulf %20, %20 : vector<8x1xf32>
    %cst_7 = arith.constant 1.000000e+00 : f32
    %22 = vector.broadcast %cst_7 : f32 to vector<8x1xf32>
    %23 = arith.subf %22, %21 : vector<8x1xf32>
    %cst_8 = arith.constant 0.000000e+00 : f32
    %cst_9 = arith.constant 1.000000e+00 : f32
    %24 = vector.broadcast %cst_8 : f32 to vector<8x1xf32>
    %25 = arith.maximumf %24, %23 : vector<8x1xf32>
    %26 = vector.broadcast %cst_9 : f32 to vector<8x1xf32>
    %27 = arith.minimumf %26, %25 : vector<8x1xf32>
    %28 = math.sqrt %27 : vector<8x1xf32>
    %cst_10 = arith.constant 0.87758255 : f32
    %29 = vector.broadcast %cst_10 : f32 to vector<8x1xf32>
    %30 = arith.mulf %20, %29 : vector<8x1xf32>
    %cst_11 = arith.constant 0.47942555 : f32
    %31 = vector.broadcast %cst_11 : f32 to vector<8x1xf32>
    %32 = arith.mulf %28, %31 : vector<8x1xf32>
    %33 = arith.subf %30, %32 : vector<8x1xf32>
    %cst_12 = arith.constant -0.87758255 : f32
    %34 = vector.broadcast %cst_12 : f32 to vector<8x1xf32>
    %35 = arith.cmpf ogt, %20, %34 : vector<8x1xf32>
    %cst_13 = arith.constant 0.239712775 : f32
    %36 = vector.broadcast %cst_13 : f32 to vector<8x1xf32>
    %37 = arith.subf %20, %36 : vector<8x1xf32>
    %38 = arith.select %35, %33, %37 : vector<8x1xi1>, vector<8x1xf32>
    %39 = arith.subf %38, %20 : vector<8x1xf32>
    %40 = vector.broadcast %39 : vector<8x1xf32> to vector<8x128xf32>
    %41 = arith.mulf %17, %40 : vector<8x128xf32>
    %42 = arith.addf %8, %41 : vector<8x128xf32>
    %cst_14 = arith.constant 3.000000e+01 : f32
    %43 = vector.broadcast %cst_14 : f32 to vector<8x128xf32>
    %44 = arith.mulf %42, %43 : vector<8x128xf32>
    %c0_15 = arith.constant 0 : index
    %c0_16 = arith.constant 0 : index
    %45 = vector.load %arg6[%c0_15, %c0_16] : memref<8x128xf32, #tpu.memory_space<vmem>>, vector<8x128xf32>
    tpu.vector_store %arg6[%c0_15, %c0_16], %44 {strides = array<i32>} : memref<8x128xf32, #tpu.memory_space<vmem>>, vector<8x128xf32>,
    return
  }
  func.func @transform_0(%arg0: i32, %arg1: i32) -> (i32, i32) {
    %c0_i32 = arith.constant 0 : i32
    %c0_i32_0 = arith.constant 0 : i32
    %c0_i32_1 = arith.constant 0 : i32
    return %c0_i32, %c0_i32_0 : i32, i32
  }
  func.func @transform_1(%arg0: i32, %arg1: i32) -> (i32, i32) {
    %c0_i32 = arith.constant 0 : i32
    %c0_i32_0 = arith.constant 0 : i32
    return %c0_i32, %arg0 : i32, i32
  }
  func.func @transform_2(%arg0: i32, %arg1: i32) -> (i32, i32) {
    %c0_i32 = arith.constant 0 : i32
    %c0_i32_0 = arith.constant 0 : i32
    return %c0_i32, %arg0 : i32, i32
  }
  func.func @transform_3(%arg0: i32, %arg1: i32) -> (i32, i32) {
    %c0_i32 = arith.constant 0 : i32
    %c0_i32_0 = arith.constant 0 : i32
    return %arg1, %c0_i32 : i32, i32
  }
  func.func @transform_4(%arg0: i32, %arg1: i32) -> (i32, i32) {
    %c0_i32 = arith.constant 0 : i32
    return %arg1, %arg0 : i32, i32
  }
}

</mosaic_0001>

<llo_original>
// kernel: tpu_custom_call.1
$region0: #{tpu_custom_call.1}
  #allocation0 [shape = 'u32[]', space=smem, size = 0x4, offset = 0x4, fixed_abs, tag = 'smem constant byte address 0x4 - core index']
  #allocation1 [shape = 'u32[144,128]{1,0:T(1,128)}', space=vmem, size = 0x12000, scoped, tag = 'internal scratch']
  %s0 = inlined_call_operand.vmem [shape: f32[8,32], index: 0, kind: input, shape index: {}]
  %s1 = inlined_call_operand.hbm [shape: f32[32,128], index: 1, kind: input, shape index: {}]
  %s2 = inlined_call_operand.vmem [shape: f32[1,128], index: 2, kind: input, shape index: {}]
  %s3 = inlined_call_operand.vmem [shape: s32[8,1], index: 3, kind: input, shape index: {}]
  %s4 = inlined_call_operand.hbm [shape: f32[8,128], index: 4, kind: output, shape index: {}]
  %s5 = sld [smem:[#allocation0]]
  $region30: #{tpu_custom_call.1} parent=0
    _
  %s7 = ssub.s32 1, %s5
  %s8 = scalar_select 0, %s7, %s5
  $region1: #{tpu_custom_call.1} parent=0
    #allocation2 [shape = 'u8[16384]{0}', space=vmem, size = 0x4000, scoped, tag = 'input window, operand 1, single buffered']
    #allocation3 [shape = 's32[1]{0}', space=sflag, size = 0x4, scoped, tag = 'scoped memory for tpu_custom_call.1']
    #allocation4 [shape = 's32[1]{0}', space=sflag, size = 0x4, scoped, tag = 'scoped memory for tpu_custom_call.1']
    #allocation5 [shape = 'u8[4096]{0}', space=vmem, size = 0x1000, scoped, tag = 'output window, operand 0, single buffered']
    %9 = vsyncpa [#allocation3], 0
    %10 = vsyncpa [#allocation4], 0
    // Predicated region
    $region2: #{tpu_custom_call.1} parent=1 // pred_check
      _
    $region3: #{tpu_custom_call.1} parent=1 // pred_check_branch
      %12 = sbr.rel (0) target = $region5
    $region4: #{tpu_custom_call.1} parent=1 // pred_region
      _
    $region5: #{tpu_custom_call.1} parent=1 // pred_fallthru
      _
    // Predicated region
    $region6: #{tpu_custom_call.1} parent=1 // pred_check
      _
    $region7: #{tpu_custom_call.1} parent=1 // pred_check_branch
      %14 = sbr.rel (0) target = $region9
    $region8: #{tpu_custom_call.1} parent=1 // pred_region
      %s16 = ssub.s32 512, 512
      %17 = vsyncadd [#allocation3], %s16
      %s18 = sshll.u32 [#allocation2], 4
      %s19 = int_to_ptr.vmem [resolvable:$true] %s18
      %24 = dma.hbm_to_vmem [thread:$0]  %s1, 512, %s19, [#allocation3], 128, 128, 8
    $region9: #{tpu_custom_call.1} parent=1 // pred_fallthru
      _
    // Predicated region
    $region10: #{tpu_custom_call.1} parent=1 // pred_check
      _
    $region11: #{tpu_custom_call.1} parent=1 // pred_check_branch
      %26 = sbr.rel (0) target = $region13
    $region12: #{tpu_custom_call.1} parent=1 // pred_region
      _
    $region13: #{tpu_custom_call.1} parent=1 // pred_fallthru
      _
    // Predicated region
    $region14: #{tpu_custom_call.1} parent=1 // pred_check
      _
    $region15: #{tpu_custom_call.1} parent=1 // pred_check_branch
      %28 = sbr.rel (0) target = $region17
    $region16: #{tpu_custom_call.1} parent=1 // pred_region
      _
    $region17: #{tpu_custom_call.1} parent=1 // pred_fallthru
      _
    // Predicated region
    $region18: #{tpu_custom_call.1} parent=1 // pred_check
      _
    $region19: #{tpu_custom_call.1} parent=1 // pred_check_branch
      %30 = sbr.rel (0) target = $region21
    $region20: #{tpu_custom_call.1} parent=1 // pred_region
      %31 = dma.done [#allocation3], 512
    $region21: #{tpu_custom_call.1} parent=1 // pred_fallthru
      _
    %s32 = smul.u32 0, 8
    %s33 = scalar_lea.vmem %s0, %s32
    %v34 = vld [vmem:[%s33] sm:$0xff]
    %v35 = vld [vmem:[#allocation2] sm:$0xff]
    %v36 = vld [vmem:[#allocation2 + $0x8] sm:$0xff]
    %v37 = vld [vmem:[#allocation2 + $0x10] sm:$0xff]
    %v38 = vld [vmem:[#allocation2 + $0x18] sm:$0xff]
    %vm39 = vcmask 261120
    %v41 = vsel %vm39, %v34, 0
    %43 = vmatprep.subr.mxu0 0.0
    %44 = vmatpush1.msra.mxu0 %v35
    %45 = vmatprep.subr.mxu0 0.0
    %46 = vmatpush1.msra.mxu0 %v36
    %47 = vmatprep.subr.mxu0 0.0
    %48 = vmatpush1.msra.mxu0 %v37
    %49 = vmatprep.subr.mxu0 0.0
    %50 = vmatpush1.msra.mxu0 %v38
    %51 = vmatprep.subr.mxu0 0.0
    %52 = vmatpush1.msra.mxu0 0.0
    %53 = vmatprep.subr.mxu0 0.0
    %54 = vmatpush1.msra.mxu0 0.0
    %55 = vmatprep.subr.mxu0 0.0
    %56 = vmatpush1.msra.mxu0 0.0
    %57 = vmatprep.subr.mxu0 0.0
    %58 = vmatpush1.msra.mxu0 0.0
    %59 = vmatprep.subr.mxu0 0.0
    %60 = vmatpush1.msra.mxu0 0.0
    %61 = vmatprep.subr.mxu0 0.0
    %62 = vmatpush1.msra.mxu0 0.0
    %63 = vmatprep.subr.mxu0 0.0
    %64 = vmatpush1.msra.mxu0 0.0
    %65 = vmatprep.subr.mxu0 0.0
    %66 = vmatpush1.msra.mxu0 0.0
    %67 = vmatprep.subr.mxu0 0.0
    %68 = vmatpush1.msra.mxu0 0.0
    %69 = vmatprep.subr.mxu0 0.0
    %70 = vmatpush1.msra.mxu0 0.0
    %71 = vmatprep.subr.mxu0 0.0
    %72 = vmatpush1.msra.mxu0 0.0
    %73 = vmatprep.subr.mxu0 0.0
    %74 = vmatpush1.msra.mxu0 0.0
    %75 = vmatprep.subr.mxu0 0.0
    %76 = vmatpush1.msra.mxu0 0.0
    %77 = vmatprep.subr.mxu0 0.0
    %78 = vmatpush1.msra.mxu0 0.0
    %79 = vmatprep.subr.mxu0 0.0
    %80 = vmatpush1.msra.mxu0 0.0
    %81 = vmatprep.subr.mxu0 0.0
    %82 = vmatpush1.msra.mxu0 0.0
    %83 = vmatprep.subr.mxu0 0.0
    %84 = vmatpush1.msra.mxu0 0.0
    %85 = vmatprep.subr.mxu0 0.0
    %86 = vmatpush1.msra.mxu0 0.0
    %87 = vmatprep.subr.mxu0 0.0
    %88 = vmatpush1.msra.mxu0 0.0
    %89 = vmatprep.subr.mxu0 0.0
    %90 = vmatpush1.msra.mxu0 0.0
    %91 = vmatprep.subr.mxu0 0.0
    %92 = vmatpush1.msra.mxu0 0.0
    %93 = vmatprep.subr.mxu0 0.0
    %94 = vmatpush1.msra.mxu0 0.0
    %95 = vmatprep.subr.mxu0 0.0
    %96 = vmatpush1.msra.mxu0 0.0
    %97 = vmatprep.subr.mxu0 0.0
    %98 = vmatpush1.msra.mxu0 0.0
    %99 = vmatprep.subr.mxu0 0.0
    %100 = vmatpush1.msra.mxu0 0.0
    %101 = vmatprep.subr.mxu0 0.0
    %102 = vmatpush1.msra.mxu0 0.0
    %103 = vmatprep.subr.mxu0 0.0
    %104 = vmatpush1.msra.mxu0 0.0
    %105 = vmatprep.subr.mxu0 0.0
    %106 = vmatpush1.msra.mxu0 0.0
    %107 = vmatprep.mubr.f32.mxu0 0.0
    %108 = vmatmul.mubr.f32.gmra.mrb[0].mxu0 %v41
    %v109 = vpop.f32.mrb[0].mxu0
    %v110 = vadd.f32 0.0, %v109
    %v111 = vpop.f32.mrb[0].mxu0
    %112 = vdwg.mxu0
    %v113 = vld [vmem:[%s2] sm:$0x1]
    %v115 = vlaneseq
    %v116 = vshrl.u32 %v115, 7
    %v117 = vsub.s32 0, %v116
    %v118 = vrot.slane %v113, %v117
    %v120 = vmul.f32 %v110, %v118
    %v121 = vld [vmem:[%s3] sm:$0xff]
    %s122 = smul.u32 0, 128
    %v123 = vstv %s122
    %v124 = vsub.s32 %v121, %v123
    %v125 = vlaneseq
    %v126 = vand.u32 %v125, 127
    %127 = vset.pattern.permute.xlu0 0
    %128 = vperm.xlu0 %127, %v124
    %v129 = vpop.permute.xlu0 %128
    %vm130 = vcmp.eq.s32.totalorder %v126, %v129
    %v131 = vsel %vm130, 1, 0
    %v132 = vcvt.s32.f32 %v131
    %v133 = vmul.f32 %v120, %v132
    %134 = vadd.xlane.f32.xlu0 %v133
    %v135 = vpop.xlane.xlu0 %134
    %v136 = vmul.f32 %v135, %v135
    %v137 = vsub.f32 1.0, %v136
    %v138 = vmax.f32 %v137, 0.0
    %v139 = vmin.f32 %v138, 1.0
    %v140 = vrsqrt.pop %v139
    %v141 = vmul.f32 %v139, %v140
    %vm142 = vcmp.eq.f32.partialorder %v139, inf
    %v143 = vsel %vm142, %v139, %v141
    %vm144 = vcmp.eq.f32.partialorder %v139, 0.0
    %v145 = vand.u32 %v139, 2147483648
    %v146 = vsel %vm144, %v145, %v143
    %v147 = vmul.f32 %v135, 0.87758255
    %v148 = vmul.f32 %v146, 0.47942555
    %v149 = vsub.f32 %v147, %v148
    %vm150 = vcmp.gt.f32.partialorder %v135, -0.87758255
    %v151 = vsub.f32 %v135, 0.23971277
    %v152 = vsel %vm150, %v149, %v151
    %v153 = vsub.f32 %v152, %v135
    %v154 = vmul.f32 %v132, %v153
    %v155 = vadd.f32 %v120, %v154
    %v156 = vmul.f32 %v155, 30.0
    %157 = vst [vmem:[#allocation5] sm:$0xff] %v156
    // Predicated region
    $region22: #{tpu_custom_call.1} parent=1 // pred_check
      _
    $region23: #{tpu_custom_call.1} parent=1 // pred_check_branch
      %159 = sbr.rel (0) target = $region25
    $region24: #{tpu_custom_call.1} parent=1 // pred_region
      %s161 = ssub.s32 128, 128
      %162 = vsyncadd [#allocation4], %s161
      %s164 = sshll.u32 [#allocation5], 4
      %s165 = int_to_ptr.vmem [resolvable:$true] %s164
      %167 = dma.vmem_to_hbm [thread:$0]  %s165, 128, %s4, [#allocation4]
    $region25: #{tpu_custom_call.1} parent=1 // pred_fallthru
      _
    // Predicated region
    $region26: #{tpu_custom_call.1} parent=1 // pred_check
      _
    $region27: #{tpu_custom_call.1} parent=1 // pred_check_branch
      %169 = sbr.rel (0) target = $region29
    $region28: #{tpu_custom_call.1} parent=1 // pred_region
      %170 = dma.done [#allocation4], 128
    $region29: #{tpu_custom_call.1} parent=1 // pred_fallthru
      _
    %171 = vsyncpa [#allocation3], 1
    %172 = vsyncpa [#allocation4], 1

</llo_original>
